<compile_context>
chip_gen: v7x
topology: tpu7x:2x2x1
jax: 0.10.0
libtpu: 0.0.40
codegen_flags: <defaults>
</compile_context>

<pallas_src>
import jax
import jax.numpy as jnp
from jax.experimental import pallas as pl
from jax.experimental.pallas import tpu as pltpu


def ffn_stack_kernel(x_ref, scale_ref, wu_ref, wd_ref, o_ref, x_carry, y_part):
    """Fused FFN stack.

    x_ref     : (B, TT, D)   input rows for this M tile (fetched once per M tile)
    scale_ref : (B, 1, D)    precomputed FiLM scales for the current layer
    wu_ref    : (D, TF)      up_proj weight slice, pre-transposed, bf16
    wd_ref    : (TF, D)      down_proj weight slice, pre-transposed, bf16
    o_ref     : (B, TT, D)   output (written only on the last (layer, F) step)
    x_carry   : (B, TT, D)   f32 VMEM scratch carrying the activation over layers
    y_part    : (B, TT, D)   f32 VMEM scratch accumulating the down-proj over F tiles
    """
    l = pl.program_id(1)
    f = pl.program_id(2)
    nl = pl.num_programs(1)
    nf = pl.num_programs(2)

    B, TT, D = x_ref.shape

    # Start of the layer stack for this M tile: load x into the f32 carry.
    @pl.when(jnp.logical_and(l == 0, f == 0))
    def _():
        x_carry[...] = x_ref[...].astype(jnp.float32)

    # Start of each layer's F sweep: zero the down-proj partial sum.
    @pl.when(f == 0)
    def _():
        y_part[...] = jnp.zeros_like(y_part)

    x = x_carry[...]                                   # (B, TT, D) f32
    scale = scale_ref[...]                             # (B, 1, D)  f32

    # FiLM with the reference's shift-overwritten-by-scale quirk:
    # out = scale * x + scale = scale * (x + 1).
    h = (scale * (x + 1.0)).astype(jnp.bfloat16)       # (B, TT, D) bf16 -> MXU
    h2 = h.reshape(B * TT, D)                          # fold batch into the MXU M dim

    # up_proj slice: (B*TT, D) @ (D, TF), f32 accumulation, then SiLU (EUP).
    u = jnp.dot(h2, wu_ref[...], preferred_element_type=jnp.float32)   # (B*TT, TF)
    u = u * jax.nn.sigmoid(u)

    # down_proj partial sum over this F tile: (B*TT, TF) @ (TF, D).
    y = jnp.dot(u.astype(jnp.bfloat16), wd_ref[...],
                preferred_element_type=jnp.float32)                    # (B*TT, D)
    y_part[...] += y.reshape(B, TT, D)

    # End of layer: residual add into the carry.
    @pl.when(f == nf - 1)
    def _():
        x_carry[...] = x + y_part[...]

    # End of stack: write the output block (block index constant across l and f).
    @pl.when(jnp.logical_and(l == nl - 1, f == nf - 1))
    def _():
        o_ref[...] = x_carry[...].astype(o_ref.dtype)


def _pick_tile(n, cap, align):
    """Largest tile <= cap that is a multiple of `align` and divides n (else full n)."""
    if n <= cap:
        return n
    d = (cap // align) * align
    while d >= align:
        if n % d == 0:
            return d
        d -= align
    return n


def prepare_ffn_params(params):
    """One-time (init-time) weight prep: stack, transpose, cast to bf16."""
    dim = params[0][1].shape[1]
    # Only the 'scale' half of the FiLM weight is live (shift is overwritten in the ref).
    w_scale = jnp.stack([w_film[:dim] for (w_film, _, _) in params]
                        ).astype(jnp.float32)                          # (depth, D, C)
    wu_t = jnp.stack([w_up.T for (_, w_up, _) in params]
                     ).astype(jnp.bfloat16)                            # (depth, D, F)
    wd_t = jnp.stack([w_down.T for (_, _, w_down) in params]
                     ).astype(jnp.bfloat16)                            # (depth, F, D)
    return w_scale, wu_t, wd_t


def ffn_stack_forward(x, cond, prepped, *, tt=None, tf=None):
    w_scale, wu_t, wd_t = prepped
    B, T, D = x.shape
    depth, _, F = wu_t.shape

    # FiLM scales for ALL layers in one batched einsum: (depth, B, 1, D) f32.
    scales = jnp.einsum('ldc,bc->lbd', w_scale,
                        cond.astype(jnp.float32))[:, :, None, :]

    # Tile sizes: big M tiles for MXU occupancy, F tiles sized for VMEM (v7x-safe).
    if tt is None:
        tt = _pick_tile(T, 256, 16)     # rows of T per step (batch folded in-block)
    if tf is None:
        tf = _pick_tile(F, 512, 128)    # F slice per step
    nm = T // tt
    nf = F // tf

    # Explicit scoped-VMEM budget derived from the chosen tiles (+headroom).
    out_isize = x.dtype.itemsize
    vmem_bytes = (
        2 * B * tt * D * 4              # x input, double-buffered
        + 2 * B * D * 4                 # scales
        + 2 * D * tf * 2                # W_up tile (bf16), double-buffered
        + 2 * tf * D * 2                # W_down tile (bf16), double-buffered
        + 2 * B * tt * D * out_isize    # output
        + 2 * B * tt * D * 4            # carry + partial-sum scratch
        + B * tt * tf * 4               # u intermediate (f32)
        + B * tt * max(tf, D) * 4       # slack for casts/copies
    )
    vmem_bytes = int(vmem_bytes * 1.5)
    vmem_bytes = max(vmem_bytes, 16 * 1024 * 1024)
    vmem_bytes = min(vmem_bytes, 64 * 1024 * 1024)

    return pl.pallas_call(
        ffn_stack_kernel,
        out_shape=jax.ShapeDtypeStruct((B, T, D), x.dtype),
        grid=(nm, depth, nf),
        in_specs=[
            # x: one (B, TT, D) block per M tile; constant across l/f -> fetched once.
            pl.BlockSpec((B, tt, D), lambda m, l, f: (0, m, 0)),
            # FiLM scales: one (B, 1, D) row per layer (constant across the F sweep).
            pl.BlockSpec((None, B, 1, D), lambda m, l, f: (l, 0, 0, 0)),
            # W_up^T slice: (D, TF) per (layer, F tile).
            pl.BlockSpec((None, D, tf), lambda m, l, f: (l, 0, f)),
            # W_down^T slice: (TF, D) per (layer, F tile).
            pl.BlockSpec((None, tf, D), lambda m, l, f: (l, f, 0)),
        ],
        out_specs=pl.BlockSpec((B, tt, D), lambda m, l, f: (0, m, 0)),
        scratch_shapes=[
            pltpu.VMEM((B, tt, D), jnp.float32),   # activation carry across layers
            pltpu.VMEM((B, tt, D), jnp.float32),   # down-proj partial sum across F tiles
        ],
        compiler_params=pltpu.CompilerParams(
            dimension_semantics=("parallel", "arbitrary", "arbitrary"),
            vmem_limit_bytes=vmem_bytes),
    )(x, scales, wu_t, wd_t)


def init_ffn_stack(key, dim, depth, ffn_expansion, dim_cond):
    """Deterministic synthetic parameters matching the PyTorch __init__ shapes."""
    d_ff = int(dim * ffn_expansion)
    params = []
    for _ in range(depth):
        key, k1, k2, k3 = jax.random.split(key, 4)
        # FiLMNorm.linear: Linear(dim_cond, 2*dim, bias=False) -> weight (2*dim, dim_cond)
        w_film = jax.random.normal(k1, (2 * dim, dim_cond), jnp.float32) / jnp.sqrt(dim_cond)
        # up_proj: LinearSwish(dim, d_ff, bias=False) -> weight (d_ff, dim)
        w_up = jax.random.normal(k2, (d_ff, dim), jnp.float32) / jnp.sqrt(dim)
        # down_proj: Linear(d_ff, dim, bias=False) -> weight (dim, d_ff)
        w_down = jax.random.normal(k3, (dim, d_ff), jnp.float32) / jnp.sqrt(d_ff)
        params.append((w_film, w_up, w_down))
    return params


def ffn_stack_reference(x, cond, params):
    """Pure-JAX f32 reference mirroring the original PyTorch semantics."""
    dim = x.shape[-1]
    xf = x.astype(jnp.float32)
    condf = cond.astype(jnp.float32)
    for (w_film, w_up, w_down) in params:
        scale = (condf @ w_film[:dim].T)[:, None, :]    # (B, 1, D)
        h = scale * xf + scale                          # FiLM (shift == scale quirk)
        u = jax.nn.silu(h @ w_up.T)                     # (B, T, F)
        y = u @ w_down.T                                # (B, T, D)
        xf = xf + y
    return xf.astype(x.dtype)


if __name__ == "__main__":
    B, T, D = 2, 8, 32
    dim_cond = 16
    depth = 2
    ffn_expansion = 2.0

    key = jax.random.PRNGKey(0)
    kx, kc, kp = jax.random.split(key, 3)
    x = jax.random.normal(kx, (B, T, D), jnp.float32)
    cond = jax.random.normal(kc, (B, dim_cond), jnp.float32)
    params = init_ffn_stack(kp, D, depth, ffn_expansion, dim_cond)

    prepped = prepare_ffn_params(params)       # init-time transpose / bf16 cast / stack
    out = ffn_stack_forward(x, cond, prepped)
    out = jax.block_until_ready(out)

    ref = ffn_stack_reference(x, cond, params)
    assert out.shape == (B, T, D)
    max_err = float(jnp.max(jnp.abs(out - ref)))
    # bf16 MXU inputs vs f32 PyTorch semantics -> small numerical gap is expected.
    assert jnp.allclose(out, ref, atol=5e-2, rtol=5e-2), \
        f"mismatch vs f32 reference, max|diff|={max_err}"

    print("KERNEL_OK")
</pallas_src>

<mosaic_0001>
module attributes {stable_mosaic.version = 11 : i64} {
  func.func @ffn_stack_kernel(%arg0: i32, %arg1: i32, %arg2: i32, %arg3: memref<2x8x32xf32, #tpu.memory_space<vmem>>, %arg4: memref<1x2x1x32xf32, #tpu.memory_space<vmem>>, %arg5: memref<1x32x64xbf16, #tpu.memory_space<vmem>>, %arg6: memref<1x64x32xbf16, #tpu.memory_space<vmem>>, %arg7: memref<2x8x32xf32, #tpu.memory_space<vmem>>, %arg8: memref<2x8x32xf32, #tpu.memory_space<vmem>>, %arg9: memref<2x8x32xf32, #tpu.memory_space<vmem>>) attributes {dimension_semantics = [#tpu.dimension_semantics<parallel>, #tpu.dimension_semantics<arbitrary>, #tpu.dimension_semantics<arbitrary>], iteration_bounds = array<i64: 1, 2, 1>, scalar_prefetch = 0 : i64, scratch_operands = 2 : i64, tpu.core_type = #tpu.core_type<tc>, window_params = [{transform_indices = @transform_0, window_bounds = array<i64: 2, 8, 32>}, {transform_indices = @transform_1, window_bounds = array<i64: 1, 2, 1, 32>}, {transform_indices = @transform_2, window_bounds = array<i64: 1, 32, 64>}, {transform_indices = @transform_3, window_bounds = array<i64: 1, 64, 32>}, {transform_indices = @transform_4, window_bounds = array<i64: 2, 8, 32>}]} {
    %c0_i32 = arith.constant 0 : i32
    %0 = arith.cmpi eq, %arg1, %c0_i32 : i32
    %c0_i32_0 = arith.constant 0 : i32
    %1 = arith.cmpi eq, %arg2, %c0_i32_0 : i32
    %2 = arith.andi %0, %1 : i1
    %3 = arith.extui %2 : i1 to i32
    %c0_i32_1 = arith.constant 0 : i32
    %4 = arith.cmpi ne, %3, %c0_i32_1 : i32
    scf.if %4 {
      %c0_29 = arith.constant 0 : index
      %c0_30 = arith.constant 0 : index
      %c0_31 = arith.constant 0 : index
      %42 = vector.load %arg3[%c0_29, %c0_30, %c0_31] : memref<2x8x32xf32, #tpu.memory_space<vmem>>, vector<2x8x32xf32>
      %c0_32 = arith.constant 0 : index
      %c0_33 = arith.constant 0 : index
      %c0_34 = arith.constant 0 : index
      %43 = vector.load %arg8[%c0_32, %c0_33, %c0_34] : memref<2x8x32xf32, #tpu.memory_space<vmem>>, vector<2x8x32xf32>
      tpu.vector_store %arg8[%c0_32, %c0_33, %c0_34], %42 {strides = array<i32>} : memref<2x8x32xf32, #tpu.memory_space<vmem>>, vector<2x8x32xf32>,
    } else {
    }
    %c0_i32_2 = arith.constant 0 : i32
    %5 = arith.cmpi eq, %arg2, %c0_i32_2 : i32
    %6 = arith.extui %5 : i1 to i32
    %c0_i32_3 = arith.constant 0 : i32
    %7 = arith.cmpi ne, %6, %c0_i32_3 : i32
    scf.if %7 {
      %cst_29 = arith.constant 0.000000e+00 : f32
      %42 = vector.broadcast %cst_29 : f32 to vector<2x8x32xf32>
      %c0_30 = arith.constant 0 : index
      %c0_31 = arith.constant 0 : index
      %c0_32 = arith.constant 0 : index
      %43 = vector.load %arg9[%c0_30, %c0_31, %c0_32] : memref<2x8x32xf32, #tpu.memory_space<vmem>>, vector<2x8x32xf32>
      tpu.vector_store %arg9[%c0_30, %c0_31, %c0_32], %42 {strides = array<i32>} : memref<2x8x32xf32, #tpu.memory_space<vmem>>, vector<2x8x32xf32>,
    } else {
    }
    %c0 = arith.constant 0 : index
    %c0_4 = arith.constant 0 : index
    %c0_5 = arith.constant 0 : index
    %8 = vector.load %arg8[%c0, %c0_4, %c0_5] : memref<2x8x32xf32, #tpu.memory_space<vmem>>, vector<2x8x32xf32>
    %c0_6 = arith.constant 0 : index
    %c0_7 = arith.constant 0 : index
    %c0_8 = arith.constant 0 : index
    %c0_9 = arith.constant 0 : index
    %9 = vector.load %arg4[%c0_6, %c0_7, %c0_8, %c0_9] : memref<1x2x1x32xf32, #tpu.memory_space<vmem>>, vector<1x2x1x32xf32>
    %10 = vector.shape_cast %9 : vector<1x2x1x32xf32> to vector<2x1x32xf32>
    %cst = arith.constant 1.000000e+00 : f32
    %11 = vector.broadcast %cst : f32 to vector<2x8x32xf32>
    %12 = arith.addf %8, %11 : vector<2x8x32xf32>
    %13 = vector.broadcast %10 : vector<2x1x32xf32> to vector<2x8x32xf32>
    %14 = arith.mulf %13, %12 : vector<2x8x32xf32>
    %15 = arith.truncf %14 : vector<2x8x32xf32> to vector<2x8x32xbf16>
    %16 = vector.shape_cast %15 : vector<2x8x32xbf16> to vector<16x32xbf16>
    %c0_10 = arith.constant 0 : index
    %c0_11 = arith.constant 0 : index
    %c0_12 = arith.constant 0 : index
    %17 = vector.load %arg5[%c0_10, %c0_11, %c0_12] : memref<1x32x64xbf16, #tpu.memory_space<vmem>>, vector<1x32x64xbf16>
    %18 = vector.shape_cast %17 : vector<1x32x64xbf16> to vector<32x64xbf16>
    %cst_13 = arith.constant dense<0.000000e+00> : vector<16x64xf32>
    %19 = tpu.matmul %16, %18, %cst_13 {dimension_numbers = #tpu.dot_dimension_numbers<[1], [0], [0], [1], [0, 0, 1, 1], [], []>} : vector<16x32xbf16>, vector<32x64xbf16>, vector<16x64xf32> -> vector<16x64xf32>
    %20 = arith.negf %19 : vector<16x64xf32>
    %21 = math.exp %20 : vector<16x64xf32>
    %cst_14 = arith.constant 1.000000e+00 : f32
    %22 = vector.broadcast %cst_14 : f32 to vector<16x64xf32>
    %23 = arith.addf %22, %21 : vector<16x64xf32>
    %24 = arith.divf %22, %23 : vector<16x64xf32>
    %25 = arith.mulf %19, %24 : vector<16x64xf32>
    %26 = arith.truncf %25 : vector<16x64xf32> to vector<16x64xbf16>
    %c0_15 = arith.constant 0 : index
    %c0_16 = arith.constant 0 : index
    %c0_17 = arith.constant 0 : index
    %27 = vector.load %arg6[%c0_15, %c0_16, %c0_17] : memref<1x64x32xbf16, #tpu.memory_space<vmem>>, vector<1x64x32xbf16>
    %28 = vector.shape_cast %27 : vector<1x64x32xbf16> to vector<64x32xbf16>
    %cst_18 = arith.constant dense<0.000000e+00> : vector<16x32xf32>
    %29 = tpu.matmul %26, %28, %cst_18 {dimension_numbers = #tpu.dot_dimension_numbers<[1], [0], [0], [1], [0, 0, 1, 1], [], []>} : vector<16x64xbf16>, vector<64x32xbf16>, vector<16x32xf32> -> vector<16x32xf32>
    %c0_19 = arith.constant 0 : index
    %c0_20 = arith.constant 0 : index
    %c0_21 = arith.constant 0 : index
    %30 = vector.load %arg9[%c0_19, %c0_20, %c0_21] : memref<2x8x32xf32, #tpu.memory_space<vmem>>, vector<2x8x32xf32>
    %31 = vector.shape_cast %29 : vector<16x32xf32> to vector<2x8x32xf32>
    %32 = arith.addf %30, %31 : vector<2x8x32xf32>
    %c0_22 = arith.constant 0 : index
    %c0_23 = arith.constant 0 : index
    %c0_24 = arith.constant 0 : index
    %33 = vector.load %arg9[%c0_22, %c0_23, %c0_24] : memref<2x8x32xf32, #tpu.memory_space<vmem>>, vector<2x8x32xf32>
    tpu.vector_store %arg9[%c0_22, %c0_23, %c0_24], %32 {strides = array<i32>} : memref<2x8x32xf32, #tpu.memory_space<vmem>>, vector<2x8x32xf32>,
    %c0_i32_25 = arith.constant 0 : i32
    %34 = arith.cmpi eq, %arg2, %c0_i32_25 : i32
    %35 = arith.extui %34 : i1 to i32
    %c0_i32_26 = arith.constant 0 : i32
    %36 = arith.cmpi ne, %35, %c0_i32_26 : i32
    scf.if %36 {
      %c0_29 = arith.constant 0 : index
      %c0_30 = arith.constant 0 : index
      %c0_31 = arith.constant 0 : index
      %42 = vector.load %arg9[%c0_29, %c0_30, %c0_31] : memref<2x8x32xf32, #tpu.memory_space<vmem>>, vector<2x8x32xf32>
      %43 = arith.addf %8, %42 : vector<2x8x32xf32>
      %c0_32 = arith.constant 0 : index
      %c0_33 = arith.constant 0 : index
      %c0_34 = arith.constant 0 : index
      %44 = vector.load %arg8[%c0_32, %c0_33, %c0_34] : memref<2x8x32xf32, #tpu.memory_space<vmem>>, vector<2x8x32xf32>
      tpu.vector_store %arg8[%c0_32, %c0_33, %c0_34], %43 {strides = array<i32>} : memref<2x8x32xf32, #tpu.memory_space<vmem>>, vector<2x8x32xf32>,
    } else {
    }
    %c1_i32 = arith.constant 1 : i32
    %37 = arith.cmpi eq, %arg1, %c1_i32 : i32
    %c0_i32_27 = arith.constant 0 : i32
    %38 = arith.cmpi eq, %arg2, %c0_i32_27 : i32
    %39 = arith.andi %37, %38 : i1
    %40 = arith.extui %39 : i1 to i32
    %c0_i32_28 = arith.constant 0 : i32
    %41 = arith.cmpi ne, %40, %c0_i32_28 : i32
    scf.if %41 {
      %c0_29 = arith.constant 0 : index
      %c0_30 = arith.constant 0 : index
      %c0_31 = arith.constant 0 : index
      %42 = vector.load %arg8[%c0_29, %c0_30, %c0_31] : memref<2x8x32xf32, #tpu.memory_space<vmem>>, vector<2x8x32xf32>
      %c0_32 = arith.constant 0 : index
      %c0_33 = arith.constant 0 : index
      %c0_34 = arith.constant 0 : index
      %43 = vector.load %arg7[%c0_32, %c0_33, %c0_34] : memref<2x8x32xf32, #tpu.memory_space<vmem>>, vector<2x8x32xf32>
      tpu.vector_store %arg7[%c0_32, %c0_33, %c0_34], %42 {strides = array<i32>} : memref<2x8x32xf32, #tpu.memory_space<vmem>>, vector<2x8x32xf32>,
    } else {
    }
    return
  }
  func.func @transform_0(%arg0: i32, %arg1: i32, %arg2: i32) -> (i32, i32, i32) {
    %c0_i32 = arith.constant 0 : i32
    %c0_i32_0 = arith.constant 0 : i32
    %c0_i32_1 = arith.constant 0 : i32
    return %c0_i32, %arg0, %c0_i32_0 : i32, i32, i32
  }
  func.func @transform_1(%arg0: i32, %arg1: i32, %arg2: i32) -> (i32, i32, i32, i32) {
    %c0_i32 = arith.constant 0 : i32
    %c0_i32_0 = arith.constant 0 : i32
    %c0_i32_1 = arith.constant 0 : i32
    %c0_i32_2 = arith.constant 0 : i32
    return %arg1, %c0_i32, %c0_i32_0, %c0_i32_1 : i32, i32, i32, i32
  }
  func.func @transform_2(%arg0: i32, %arg1: i32, %arg2: i32) -> (i32, i32, i32) {
    %c0_i32 = arith.constant 0 : i32
    %c0_i32_0 = arith.constant 0 : i32
    return %arg1, %c0_i32, %arg2 : i32, i32, i32
  }
  func.func @transform_3(%arg0: i32, %arg1: i32, %arg2: i32) -> (i32, i32, i32) {
    %c0_i32 = arith.constant 0 : i32
    %c0_i32_0 = arith.constant 0 : i32
    return %arg1, %arg2, %c0_i32 : i32, i32, i32
  }
  func.func @transform_4(%arg0: i32, %arg1: i32, %arg2: i32) -> (i32, i32, i32) {
    %c0_i32 = arith.constant 0 : i32
    %c0_i32_0 = arith.constant 0 : i32
    %c0_i32_1 = arith.constant 0 : i32
    return %c0_i32, %arg0, %c0_i32_0 : i32, i32, i32
  }
}

</mosaic_0001>

<llo_original>
// kernel: tpu_custom_call.1
$region0: #{tpu_custom_call.1}
  #allocation0 [shape = 'u32[]', space=smem, size = 0x4, offset = 0x4, fixed_abs, tag = 'smem constant byte address 0x4 - core index']
  #allocation1 [shape = 'u32[144,128]{1,0:T(1,128)}', space=vmem, size = 0x12000, scoped, tag = 'internal scratch']
  #allocation2 [shape = 'f32[2,8,32]{2,1,0:T(8,128)}', space=vmem, size = 0x2000, scoped, tag = 'scratch operand']
  #allocation3 [shape = 'f32[2,8,32]{2,1,0:T(8,128)}', space=vmem, size = 0x2000, scoped, tag = 'scratch operand']
  %s0 = inlined_call_operand.vmem [shape: f32[2,8,32], index: 0, kind: input, shape index: {}]
  %s1 = inlined_call_operand.vmem [shape: f32[2,2,1,32], index: 1, kind: input, shape index: {}]
  %s2 = inlined_call_operand.vmem [shape: bf16[2,32,64], index: 2, kind: input, shape index: {}]
  %s3 = inlined_call_operand.vmem [shape: bf16[2,64,32], index: 3, kind: input, shape index: {}]
  %s4 = inlined_call_operand.hbm [shape: f32[2,8,32], index: 4, kind: output, shape index: {}]
  %s5 = sld [smem:[#allocation0]]
  $region65: #{tpu_custom_call.1} parent=0
    _
  %s7 = ssub.s32 1, %s5
  %s8 = scalar_select 0, %s7, %s5
  $region1: #{tpu_custom_call.1} parent=0
    #allocation4 [shape = 'u8[8192]{0}', space=vmem, size = 0x2000, scoped, tag = 'output window, operand 0, single buffered']
    #allocation5 [shape = 's32[2]{0}', space=sflag, size = 0x8, scoped, tag = 'scoped memory for tpu_custom_call.1']
    %9 = vsyncpa [#allocation5], 0
    loop: start=0, step=1, limit=4
    $region2: #{tpu_custom_call.1} parent=1 // loop_pre_header
      _
    $region3: #{tpu_custom_call.1} parent=1 // loop_header
      %s11 = sphi 0, %s15
      %p12 = scmp.ge.s32.totalorder %s11, 4
      %s18 = sphi 0, %s37
      %s19 = sphi 0, %s33
      %s20 = sphi 0, %s29
      %s21 = sphi 0, %s18
      %s22 = sphi 0, %s19
      %s23 = sphi 0, %s20
      %s24 = sphi 0, %s21
      %s25 = sphi 0, %s22
      %s26 = sphi 0, %s23
      %s40 = sphi 0, %s42
      %s43 = sphi 0, %s40
      %s44 = sphi 0, %s43
      %s60 = sphi 0, %s44
      %s66 = sphi 0, %s68
      %s69 = sphi 0, %s66
      %s70 = sphi 0, %s69
      %s86 = sphi 0, %s70
      %s94 = sphi 0, %s96
      %s97 = sphi 0, %s94
      %s98 = sphi 0, %s97
      %s114 = sphi 0, %s98
      %s122 = sphi 0, %s124
      %s125 = sphi 0, %s122
      %s126 = sphi 0, %s125
      %s142 = sphi 0, %s126
      %s148 = sphi 0, %s150
      %s151 = sphi 0, %s148
      %s152 = sphi 0, %s151
      %s168 = sphi 0, %s152
    $region4: #{tpu_custom_call.1} parent=1 // loop_header_branch
      %14 = sbr.rel (%p12) target = $region8
    $region5: #{tpu_custom_call.1} parent=1 // loop_body
      %s16 = ssub.s32 %s11, 1
      %s17 = ssub.s32 %s11, 2
      %s27 = sadd.s32 1, %s20
      %p28 = scmp.ge.s32.totalorder %s27, 1
      %s29 = scalar_select %p28, 0, %s27
      %s30 = sadd.s32 1, %s19
      %s31 = scalar_select %p28, %s30, %s19
      %p32 = scmp.ge.s32.totalorder %s31, 2
      %s33 = scalar_select %p32, 0, %s31
      %s34 = sadd.s32 1, %s18
      %s35 = scalar_select %p32, %s34, %s18
      %p36 = scmp.ge.s32.totalorder %s35, 1
      %s37 = scalar_select %p36, 0, %s35
      %s38 = ssub.s32 %s18, %s37
      %p39 = scmp.eq.s32.totalorder %s38, 0
      %s41 = sadd.s32 %s40, 1
      %s42 = scalar_select %p39, %s40, %s41
      %p45 = pneg %p39
      %p46 = scmp.eq.s32.totalorder %s11, 1
      %p47 = por %p45, %p46
      %p48 = scmp.ne.s32.totalorder %s40, %s43
      %p49 = scmp.eq.s32.totalorder %s11, 0
      %p50 = por %p48, %p49
      %p51 = scmp.ne.s32.totalorder %s40, %s43
      %p52 = scmp.eq.s32.totalorder %s16, 1
      %p53 = por %p51, %p52
      %p54 = scmp.ne.s32.totalorder %s43, %s44
      %p55 = scmp.eq.s32.totalorder %s16, 0
      %p56 = por %p54, %p55
      %p57 = scmp.ne.s32.totalorder %s43, %s44
      %p58 = scmp.eq.s32.totalorder %s17, 1
      %p59 = por %p57, %p58
      %p61 = scmp.ne.s32.totalorder %s44, %s60
      %p62 = scmp.eq.s32.totalorder %s17, 0
      %p63 = por %p61, %p62
      %s64 = ssub.s32 %s19, %s33
      %p65 = scmp.eq.s32.totalorder %s64, 0
      %s67 = sadd.s32 %s66, 1
      %s68 = scalar_select %p65, %s66, %s67
      %p71 = pneg %p65
      %p72 = scmp.eq.s32.totalorder %s11, 1
      %p73 = por %p71, %p72
      %p74 = scmp.ne.s32.totalorder %s66, %s69
      %p75 = scmp.eq.s32.totalorder %s11, 0
      %p76 = por %p74, %p75
      %p77 = scmp.ne.s32.totalorder %s66, %s69
      %p78 = scmp.eq.s32.totalorder %s16, 1
      %p79 = por %p77, %p78
      %p80 = scmp.ne.s32.totalorder %s69, %s70
      %p81 = scmp.eq.s32.totalorder %s16, 0
      %p82 = por %p80, %p81
      %p83 = scmp.ne.s32.totalorder %s69, %s70
      %p84 = scmp.eq.s32.totalorder %s17, 1
      %p85 = por %p83, %p84
      %p87 = scmp.ne.s32.totalorder %s70, %s86
      %p88 = scmp.eq.s32.totalorder %s17, 0
      %p89 = por %p87, %p88
      %s90 = ssub.s32 %s19, %s33
      %s91 = ssub.s32 %s20, %s29
      %s92 = sor.u32 %s90, %s91
      %p93 = scmp.eq.s32.totalorder %s92, 0
      %s95 = sadd.s32 %s94, 1
      %s96 = scalar_select %p93, %s94, %s95
      %p99 = pneg %p93
      %p100 = scmp.eq.s32.totalorder %s11, 1
      %p101 = por %p99, %p100
      %p102 = scmp.ne.s32.totalorder %s94, %s97
      %p103 = scmp.eq.s32.totalorder %s11, 0
      %p104 = por %p102, %p103
      %p105 = scmp.ne.s32.totalorder %s94, %s97
      %p106 = scmp.eq.s32.totalorder %s16, 1
      %p107 = por %p105, %p106
      %p108 = scmp.ne.s32.totalorder %s97, %s98
      %p109 = scmp.eq.s32.totalorder %s16, 0
      %p110 = por %p108, %p109
      %p111 = scmp.ne.s32.totalorder %s97, %s98
      %p112 = scmp.eq.s32.totalorder %s17, 1
      %p113 = por %p111, %p112
      %p115 = scmp.ne.s32.totalorder %s98, %s114
      %p116 = scmp.eq.s32.totalorder %s17, 0
      %p117 = por %p115, %p116
      %s118 = ssub.s32 %s19, %s33
      %s119 = ssub.s32 %s20, %s29
      %s120 = sor.u32 %s118, %s119
      %p121 = scmp.eq.s32.totalorder %s120, 0
      %s123 = sadd.s32 %s122, 1
      %s124 = scalar_select %p121, %s122, %s123
      %p127 = pneg %p121
      %p128 = scmp.eq.s32.totalorder %s11, 1
      %p129 = por %p127, %p128
      %p130 = scmp.ne.s32.totalorder %s122, %s125
      %p131 = scmp.eq.s32.totalorder %s11, 0
      %p132 = por %p130, %p131
      %p133 = scmp.ne.s32.totalorder %s122, %s125
      %p134 = scmp.eq.s32.totalorder %s16, 1
      %p135 = por %p133, %p134
      %p136 = scmp.ne.s32.totalorder %s125, %s126
      %p137 = scmp.eq.s32.totalorder %s16, 0
      %p138 = por %p136, %p137
      %p139 = scmp.ne.s32.totalorder %s125, %s126
      %p140 = scmp.eq.s32.totalorder %s17, 1
      %p141 = por %p139, %p140
      %p143 = scmp.ne.s32.totalorder %s126, %s142
      %p144 = scmp.eq.s32.totalorder %s17, 0
      %p145 = por %p143, %p144
      %s146 = ssub.s32 %s18, %s37
      %p147 = scmp.eq.s32.totalorder %s146, 0
      %s149 = sadd.s32 %s148, 1
      %s150 = scalar_select %p147, %s148, %s149
      %p153 = pneg %p147
      %p154 = scmp.eq.s32.totalorder %s11, 1
      %p155 = por %p153, %p154
      %p156 = scmp.ne.s32.totalorder %s148, %s151
      %p157 = scmp.eq.s32.totalorder %s11, 0
      %p158 = por %p156, %p157
      %p159 = scmp.ne.s32.totalorder %s148, %s151
      %p160 = scmp.eq.s32.totalorder %s16, 1
      %p161 = por %p159, %p160
      %p162 = scmp.ne.s32.totalorder %s151, %s152
      %p163 = scmp.eq.s32.totalorder %s16, 0
      %p164 = por %p162, %p163
      %p165 = scmp.ne.s32.totalorder %s151, %s152
      %p166 = scmp.eq.s32.totalorder %s17, 1
      %p167 = por %p165, %p166
      %p169 = scmp.ne.s32.totalorder %s152, %s168
      %p170 = scmp.eq.s32.totalorder %s17, 0
      %p171 = por %p169, %p170
      %p172 = scmp.le.s32.totalorder 1, %s11
      %p173 = scmp.lt.s32.totalorder %s11, 3
      %p174 = pnand %p172, %p173
      %p175 = pneg %p174
      // Predicated region
      $region9: #{tpu_custom_call.1} parent=5 // pred_check
        _
      $region10: #{tpu_custom_call.1} parent=5 // pred_check_branch
        %177 = sbr.rel (%p174) target = $region12
      $region11: #{tpu_custom_call.1} parent=5 // pred_region
        %s178 = ssub.s32 %s11, 1
        // Predicated region
        $region13: #{tpu_custom_call.1} parent=11 // pred_check
          %p179 = pneg %p56
        $region14: #{tpu_custom_call.1} parent=11 // pred_check_branch
          %181 = sbr.rel (%p179) target = $region16
        $region15: #{tpu_custom_call.1} parent=11 // pred_region
          %p182 = scmp.lt.s32.totalorder %s21, 0
          %s183 = scalar_select %p182, %s21, 0
          %s184 = smul.addr %s183, 8
          %s185 = scalar_lea.vmem %s0, %s184
        $region16: #{tpu_custom_call.1} parent=11 // pred_fallthru
          _
      $region12: #{tpu_custom_call.1} parent=5 // pred_fallthru
        _
      %p186 = scmp.lt.s32.totalorder %s11, 2
      // Predicated region
      $region17: #{tpu_custom_call.1} parent=5 // pred_check
        %p187 = pneg %p186
      $region18: #{tpu_custom_call.1} parent=5 // pred_check_branch
        %189 = sbr.rel (%p187) target = $region20
      $region19: #{tpu_custom_call.1} parent=5 // pred_region
        // Predicated region
        $region21: #{tpu_custom_call.1} parent=19 // pred_check
          %p190 = pneg %p76
        $region22: #{tpu_custom_call.1} parent=19 // pred_check_branch
          %192 = sbr.rel (%p190) target = $region24
        $region23: #{tpu_custom_call.1} parent=19 // pred_region
          %p193 = scmp.lt.s32.totalorder %s19, 1
          %s194 = scalar_select %p193, %s19, 1
          %s195 = smul.addr %s194, 2
          %s196 = scalar_lea.vmem %s1, %s195
        $region24: #{tpu_custom_call.1} parent=19 // pred_fallthru
          _
        // Predicated region
        $region25: #{tpu_custom_call.1} parent=19 // pred_check
          %p197 = pneg %p104
        $region26: #{tpu_custom_call.1} parent=19 // pred_check_branch
          %199 = sbr.rel (%p197) target = $region28
        $region27: #{tpu_custom_call.1} parent=19 // pred_region
          %p200 = scmp.lt.s32.totalorder %s19, 1
          %s201 = scalar_select %p200, %s19, 1
          %p202 = scmp.lt.s32.totalorder %s20, 0
          %s203 = scalar_select %p202, %s20, 0
          %s204 = smul.addr %s201, 4
          %s205 = sadd.s32 %s203, %s204
          %s206 = smul.addr %s205, 4
          %s207 = scalar_lea.vmem %s2, %s206
        $region28: #{tpu_custom_call.1} parent=19 // pred_fallthru
          _
        // Predicated region
        $region29: #{tpu_custom_call.1} parent=19 // pred_check
          %p208 = pneg %p132
        $region30: #{tpu_custom_call.1} parent=19 // pred_check_branch
          %210 = sbr.rel (%p208) target = $region32
        $region31: #{tpu_custom_call.1} parent=19 // pred_region
          %s211 = smul.u32 8, %s20
          %p212 = scmp.lt.s32.totalorder %s19, 1
          %s213 = scalar_select %p212, %s19, 1
          %p214 = scmp.lt.s32.totalorder %s211, 7
          %s215 = scalar_select %p214, %s211, 7
          %s216 = smul.addr %s213, 8
          %s217 = sadd.s32 %s215, %s216
          %s218 = smul.addr %s217, 4
          %s219 = scalar_lea.vmem %s3, %s218
          %s220 = smul.u32 8, %s20
        $region32: #{tpu_custom_call.1} parent=19 // pred_fallthru
          _
      $region20: #{tpu_custom_call.1} parent=5 // pred_fallthru
        _
      %p221 = scmp.le.s32.totalorder 1, %s11
      %p222 = scmp.lt.s32.totalorder %s11, 3
      %p223 = pnand %p221, %p222
      %p224 = pneg %p223
      // Predicated region
      $region33: #{tpu_custom_call.1} parent=5 // pred_check
        _
      $region34: #{tpu_custom_call.1} parent=5 // pred_check_branch
        %226 = sbr.rel (%p223) target = $region36
      $region35: #{tpu_custom_call.1} parent=5 // pred_region
        %s227 = ssub.s32 %s11, 1
        %p228 = scmp.lt.s32.totalorder %s21, 0
        %s229 = scalar_select %p228, %s21, 0
        %s230 = smul.addr %s229, 8
        %s231 = scalar_lea.vmem %s0, %s230
        %p232 = pneg %p56
        %p233 = pneg %p53
        %p234 = scmp.lt.s32.totalorder %s22, 1
        %s235 = scalar_select %p234, %s22, 1
        %s236 = smul.addr %s235, 2
        %s237 = scalar_lea.vmem %s1, %s236
        %p238 = pneg %p82
        %p239 = pneg %p79
        %p240 = scmp.lt.s32.totalorder %s22, 1
        %s241 = scalar_select %p240, %s22, 1
        %p242 = scmp.lt.s32.totalorder %s23, 0
        %s243 = scalar_select %p242, %s23, 0
        %s244 = smul.addr %s241, 4
        %s245 = sadd.s32 %s243, %s244
        %s246 = smul.addr %s245, 4
        %s247 = scalar_lea.vmem %s2, %s246
        %p248 = pneg %p110
        %p249 = pneg %p107
        %s250 = smul.u32 8, %s23
        %p251 = scmp.lt.s32.totalorder %s22, 1
        %s252 = scalar_select %p251, %s22, 1
        %p253 = scmp.lt.s32.totalorder %s250, 7
        %s254 = scalar_select %p253, %s250, 7
        %s255 = smul.addr %s252, 8
        %s256 = sadd.s32 %s254, %s255
        %s257 = smul.addr %s256, 4
        %s258 = scalar_lea.vmem %s3, %s257
        %p259 = pneg %p138
        %p260 = pneg %p135
        %p261 = pneg %p164
        %p262 = pneg %p161
        %p263 = scmp.lt.s32.totalorder %s21, 0
        %s264 = scalar_select %p263, %s21, 0
        %s265 = smul.addr %s264, 8
        %s266 = scalar_lea.vmem %s0, %s265
        %p267 = scmp.lt.s32.totalorder %s22, 1
        %s268 = scalar_select %p267, %s22, 1
        %s269 = smul.addr %s268, 2
        %s270 = scalar_lea.vmem %s1, %s269
        %p271 = scmp.lt.s32.totalorder %s22, 1
        %s272 = scalar_select %p271, %s22, 1
        %p273 = scmp.lt.s32.totalorder %s23, 0
        %s274 = scalar_select %p273, %s23, 0
        %s275 = smul.addr %s272, 4
        %s276 = sadd.s32 %s274, %s275
        %s277 = smul.addr %s276, 4
        %s278 = scalar_lea.vmem %s2, %s277
        %s279 = smul.u32 8, %s23
        %p280 = scmp.lt.s32.totalorder %s22, 1
        %s281 = scalar_select %p280, %s22, 1
        %p282 = scmp.lt.s32.totalorder %s279, 7
        %s283 = scalar_select %p282, %s279, 7
        %s284 = smul.addr %s281, 8
        %s285 = sadd.s32 %s283, %s284
        %s286 = smul.addr %s285, 4
        %s287 = scalar_lea.vmem %s3, %s286
        %s288 = smul.u32 8, %s23
        %p290 = scmp.eq.s32.totalorder %s22, 0
        %p291 = scmp.eq.s32.totalorder %s23, 0
        %p292 = pnand %p290, %p291
        %p293 = pneg %p292
        // Predicated region
        $region37: #{tpu_custom_call.1} parent=35 // pred_check
          _
        $region38: #{tpu_custom_call.1} parent=35 // pred_check_branch
          %295 = sbr.rel (%p292) target = $region40
        $region39: #{tpu_custom_call.1} parent=35 // pred_region
          %v296 = vld [vmem:[%s266] sm:$0xff]
          %v297 = vld [vmem:[%s266 + $0x8] sm:$0xff]
          %vm298 = vcmask 261120
          %299 = vst.msk [vmem:[#allocation2] sm:$0xff] %vm298, %v296
          %300 = vst.msk [vmem:[#allocation2 + $0x8] sm:$0xff] %vm298, %v297
        $region40: #{tpu_custom_call.1} parent=35 // pred_fallthru
          _
        // Predicated region
        $region41: #{tpu_custom_call.1} parent=35 // pred_check
          %p301 = pneg %p291
        $region42: #{tpu_custom_call.1} parent=35 // pred_check_branch
          %303 = sbr.rel (%p301) target = $region44
        $region43: #{tpu_custom_call.1} parent=35 // pred_region
          %vm304 = vcmask 261120
          %305 = vst.msk [vmem:[#allocation3] sm:$0xff] %vm304, 0.0
          %306 = vst.msk [vmem:[#allocation3 + $0x8] sm:$0xff] %vm304, 0.0
        $region44: #{tpu_custom_call.1} parent=35 // pred_fallthru
          _
        %v307 = vld [vmem:[#allocation2] sm:$0xff]
        %v308 = vld [vmem:[#allocation2 + $0x8] sm:$0xff]
        %v309 = vld [vmem:[%s270] sm:$0x1]
        %v310 = vld [vmem:[%s270 + $0x1] sm:$0x1]
        %v311 = vadd.f32 %v307, 1.0
        %v312 = vadd.f32 %v308, 1.0
        %v315 = vlaneseq
        %v316 = vshrl.u32 %v315, 7
        %v317 = vsub.s32 0, %v316
        %v318 = vrot.slane %v309, %v317
        %v319 = vlaneseq
        %v320 = vshrl.u32 %v319, 7
        %v321 = vsub.s32 0, %v320
        %v322 = vrot.slane %v310, %v321
        %v325 = vmul.f32 %v318, %v311
        %v326 = vmul.f32 %v322, %v312
        %v327 = vpack.c.bf16 %v325, %v325
        %v328 = vpack.c.bf16 %v326, %v326
        %v329 = vld [vmem:[%s278] sm:$0xf]
        %v330 = vld [vmem:[%s278 + $0x4] sm:$0xf]
        %v331 = vld [vmem:[%s278 + $0x8] sm:$0xf]
        %v332 = vld [vmem:[%s278 + $0xc] sm:$0xf]
        %v335 = vunpack.c.l.b16 %v327
        %v336 = vunpack.c.l.b16 %v328
        %v337 = vpack.c.b16 %v336, %v335
        %v342 = vunpack.c.l.b16 %v329
        %v343 = vunpack.c.l.b16 %v330
        %v344 = vunpack.c.l.b16 %v331
        %v345 = vunpack.c.l.b16 %v332
        %v346 = vpack.c.b16 %v343, %v342
        %v347 = vpack.c.b16 %v345, %v344
        %vm350 = vcmask 261120
        %v352 = vsel %vm350, %v337, 0
        %354 = vmatprep.subr.bf16.mxu0 0
        %355 = vmatpush1.bf16.msra.mxu0 %v346
        %356 = vmatprep.subr.bf16.mxu0 0
        %357 = vmatpush1.bf16.msra.mxu0 %v347
        %358 = vmatprep.subr.bf16.mxu0 0
        %359 = vmatpush1.bf16.msra.mxu0 0
        %360 = vmatprep.subr.bf16.mxu0 0
        %361 = vmatpush1.bf16.msra.mxu0 0
        %362 = vmatprep.subr.bf16.mxu0 0
        %363 = vmatpush1.bf16.msra.mxu0 0
        %364 = vmatprep.subr.bf16.mxu0 0
        %365 = vmatpush1.bf16.msra.mxu0 0
        %366 = vmatprep.subr.bf16.mxu0 0
        %367 = vmatpush1.bf16.msra.mxu0 0
        %368 = vmatprep.subr.bf16.mxu0 0
        %369 = vmatpush1.bf16.msra.mxu0 0
        %370 = vmatprep.subr.bf16.mxu0 0
        %371 = vmatpush1.bf16.msra.mxu0 0
        %372 = vmatprep.subr.bf16.mxu0 0
        %373 = vmatpush1.bf16.msra.mxu0 0
        %374 = vmatprep.subr.bf16.mxu0 0
        %375 = vmatpush1.bf16.msra.mxu0 0
        %376 = vmatprep.subr.bf16.mxu0 0
        %377 = vmatpush1.bf16.msra.mxu0 0
        %378 = vmatprep.subr.bf16.mxu0 0
        %379 = vmatpush1.bf16.msra.mxu0 0
        %380 = vmatprep.subr.bf16.mxu0 0
        %381 = vmatpush1.bf16.msra.mxu0 0
        %382 = vmatprep.subr.bf16.mxu0 0
        %383 = vmatpush1.bf16.msra.mxu0 0
        %384 = vmatprep.subr.bf16.mxu0 0
        %385 = vmatpush1.bf16.msra.mxu0 0
        %386 = vmatprep.mubr.bf16.mxu0 0
        %387 = vmatmul.mubr.bf16.gmra.mrb[0].mxu0 %v352
        %v388 = vpop.f32.mrb[0].mxu0
        %v389 = vadd.f32 0.0, %v388
        %v390 = vpop.f32.mrb[0].mxu0
        %v391 = vpop.f32.mrb[0].mxu0
        %v392 = vadd.f32 0.0, %v391
        %v393 = vpop.f32.mrb[0].mxu0
        %394 = vdwg.mxu0
        %v395 = vxor.u32 %v389, 2147483648
        %v396 = vxor.u32 %v392, 2147483648
        %v397 = vmul.f32 %v395, 1.442695
        %v398 = vpow.pop %v397
        %v399 = vmul.f32 %v396, 1.442695
        %v400 = vpow.pop %v399
        %v401 = vadd.f32 %v398, 1.0
        %v402 = vadd.f32 %v400, 1.0
        %v403 = vrcp.pop %v401
        %v404 = vmul.f32 1.0, %v403
        %v405 = vrcp.pop %v402
        %v406 = vmul.f32 1.0, %v405
        %v407 = vmul.f32 %v389, %v404
        %v408 = vmul.f32 %v392, %v406
        %v409 = vpack.c.bf16 %v408, %v407
        %v410 = vld [vmem:[%s287] sm:$0xf]
        %v411 = vld [vmem:[%s287 + $0x4] sm:$0xf]
        %v412 = vld [vmem:[%s287 + $0x8] sm:$0xf]
        %v413 = vld [vmem:[%s287 + $0xc] sm:$0xf]
        %v414 = vld [vmem:[%s287 + $0x10] sm:$0xf]
        %v415 = vld [vmem:[%s287 + $0x14] sm:$0xf]
        %v416 = vld [vmem:[%s287 + $0x18] sm:$0xf]
        %v417 = vld [vmem:[%s287 + $0x1c] sm:$0xf]
        %v426 = vunpack.c.l.b16 %v410
        %v427 = vunpack.c.l.b16 %v411
        %v428 = vunpack.c.l.b16 %v412
        %v429 = vunpack.c.l.b16 %v413
        %v430 = vunpack.c.l.b16 %v414
        %v431 = vunpack.c.l.b16 %v415
        %v432 = vunpack.c.l.b16 %v416
        %v433 = vunpack.c.l.b16 %v417
        %v434 = vpack.c.b16 %v427, %v426
        %v435 = vpack.c.b16 %v429, %v428
        %v436 = vpack.c.b16 %v431, %v430
        %v437 = vpack.c.b16 %v433, %v432
        %vm442 = vcmask 523264
        %v444 = vsel %vm442, %v409, 0
        %446 = vmatprep.subr.bf16.mxu0 0
        %447 = vmatpush1.bf16.msra.mxu0 %v434
        %448 = vmatprep.subr.bf16.mxu0 0
        %449 = vmatpush1.bf16.msra.mxu0 %v435
        %450 = vmatprep.subr.bf16.mxu0 0
        %451 = vmatpush1.bf16.msra.mxu0 %v436
        %452 = vmatprep.subr.bf16.mxu0 0
        %453 = vmatpush1.bf16.msra.mxu0 %v437
        %454 = vmatprep.subr.bf16.mxu0 0
        %455 = vmatpush1.bf16.msra.mxu0 0
        %456 = vmatprep.subr.bf16.mxu0 0
        %457 = vmatpush1.bf16.msra.mxu0 0
        %458 = vmatprep.subr.bf16.mxu0 0
        %459 = vmatpush1.bf16.msra.mxu0 0
        %460 = vmatprep.subr.bf16.mxu0 0
        %461 = vmatpush1.bf16.msra.mxu0 0
        %462 = vmatprep.subr.bf16.mxu0 0
        %463 = vmatpush1.bf16.msra.mxu0 0
        %464 = vmatprep.subr.bf16.mxu0 0
        %465 = vmatpush1.bf16.msra.mxu0 0
        %466 = vmatprep.subr.bf16.mxu0 0
        %467 = vmatpush1.bf16.msra.mxu0 0
        %468 = vmatprep.subr.bf16.mxu0 0
        %469 = vmatpush1.bf16.msra.mxu0 0
        %470 = vmatprep.subr.bf16.mxu0 0
        %471 = vmatpush1.bf16.msra.mxu0 0
        %472 = vmatprep.subr.bf16.mxu0 0
        %473 = vmatpush1.bf16.msra.mxu0 0
        %474 = vmatprep.subr.bf16.mxu0 0
        %475 = vmatpush1.bf16.msra.mxu0 0
        %476 = vmatprep.subr.bf16.mxu0 0
        %477 = vmatpush1.bf16.msra.mxu0 0
        %478 = vmatprep.mubr.bf16.mxu0 0
        %479 = vmatmul.mubr.bf16.gmra.mrb[0].mxu0 %v444
        %v480 = vpop.f32.mrb[0].mxu0
        %v481 = vadd.f32 0.0, %v480
        %v482 = vpop.f32.mrb[0].mxu0
        %v483 = vpop.f32.mrb[0].mxu0
        %v484 = vadd.f32 0.0, %v483
        %v485 = vpop.f32.mrb[0].mxu0
        %486 = vdwg.mxu0
        %v487 = vld [vmem:[#allocation3] sm:$0xff]
        %v488 = vld [vmem:[#allocation3 + $0x8] sm:$0xff]
        %v489 = vadd.f32 %v487, %v481
        %v490 = vadd.f32 %v488, %v484
        %491 = vst.msk [vmem:[#allocation3] sm:$0xff] %vm350, %v489
        %492 = vst.msk [vmem:[#allocation3 + $0x8] sm:$0xff] %vm350, %v490
        // Predicated region
        $region45: #{tpu_custom_call.1} parent=35 // pred_check
          %p493 = pneg %p291
        $region46: #{tpu_custom_call.1} parent=35 // pred_check_branch
          %495 = sbr.rel (%p493) target = $region48
        $region47: #{tpu_custom_call.1} parent=35 // pred_region
          %v496 = vld [vmem:[#allocation3] sm:$0xff]
          %v497 = vld [vmem:[#allocation3 + $0x8] sm:$0xff]
          %v498 = vadd.f32 %v307, %v496
          %v499 = vadd.f32 %v308, %v497
          %500 = vst.msk [vmem:[#allocation2] sm:$0xff] %vm350, %v498
          %501 = vst.msk [vmem:[#allocation2 + $0x8] sm:$0xff] %vm350, %v499
        $region48: #{tpu_custom_call.1} parent=35 // pred_fallthru
          _
        %p502 = scmp.eq.s32.totalorder %s22, 1
        %p503 = pnand %p502, %p291
        %p504 = pneg %p503
        // Predicated region
        $region49: #{tpu_custom_call.1} parent=35 // pred_check
          _
        $region50: #{tpu_custom_call.1} parent=35 // pred_check_branch
          %506 = sbr.rel (%p503) target = $region52
        $region51: #{tpu_custom_call.1} parent=35 // pred_region
          %v507 = vld [vmem:[#allocation2] sm:$0xff]
          %v508 = vld [vmem:[#allocation2 + $0x8] sm:$0xff]
          %509 = vst.msk [vmem:[#allocation4] sm:$0xff] %vm350, %v507
          %510 = vst.msk [vmem:[#allocation4 + $0x8] sm:$0xff] %vm350, %v508
        $region52: #{tpu_custom_call.1} parent=35 // pred_fallthru
          _
        // Predicated region
        $region53: #{tpu_custom_call.1} parent=35 // pred_check
          %p511 = pneg %p161
        $region54: #{tpu_custom_call.1} parent=35 // pred_check_branch
          %513 = sbr.rel (%p511) target = $region56
        $region55: #{tpu_custom_call.1} parent=35 // pred_region
          %s515 = ssub.s32 256, 256
          %516 = vsyncadd [#allocation5], %s515
          %s517 = smul.addr %s21, 128
          %s518 = scalar_lea.hbm %s4, %s517
          %s519 = sshll.u32 [#allocation4], 4
          %s520 = int_to_ptr.vmem [resolvable:$true] %s519
          %525 = dma.vmem_to_hbm [thread:$0]  %s520, 256, %s518, [#allocation5], 128, 128, 8
        $region56: #{tpu_custom_call.1} parent=35 // pred_fallthru
          _
        // Predicated region
        $region57: #{tpu_custom_call.1} parent=35 // pred_check
          %p526 = pneg %p161
        $region58: #{tpu_custom_call.1} parent=35 // pred_check_branch
          %528 = sbr.rel (%p526) target = $region60
        $region59: #{tpu_custom_call.1} parent=35 // pred_region
          %529 = dma.done [#allocation5], 256
        $region60: #{tpu_custom_call.1} parent=35 // pred_fallthru
          _
      $region36: #{tpu_custom_call.1} parent=5 // pred_fallthru
        _
      %p530 = scmp.le.s32.totalorder 2, %s11
      // Predicated region
      $region61: #{tpu_custom_call.1} parent=5 // pred_check
        %p531 = pneg %p530
      $region62: #{tpu_custom_call.1} parent=5 // pred_check_branch
        %533 = sbr.rel (%p531) target = $region64
      $region63: #{tpu_custom_call.1} parent=5 // pred_region
        %s534 = ssub.s32 %s11, 2
      $region64: #{tpu_custom_call.1} parent=5 // pred_fallthru
        _
    $region6: #{tpu_custom_call.1} parent=1 // loop_footer
      %s15 = sadd.s32 1, %s11
    $region7: #{tpu_custom_call.1} parent=1 // loop_footer_branch
      %10 = sbr.rel target = $region3
    $region8: #{tpu_custom_call.1} parent=1 // loop_exit
      _
    %535 = vsyncpa [#allocation5], 1
    %s536 = scalar_lea.sflag [#allocation5], 1
    %537 = vsyncpa %s536, 1

</llo_original>
